<compile_context>
chip_gen: v5e
topology: v5e:2x2
jax: 0.10.0
libtpu: 0.0.40
codegen_flags: <defaults>
</compile_context>

<pallas_src>
from functools import partial

import jax
import jax.numpy as jnp
from jax.experimental import pallas as pl
from jax.experimental.pallas import tpu as pltpu


def _ce2d_kernel(x_ref, t_ref, loss_ref, cnt_ref, acc_ref, cnt_acc_ref, *,
                 hw, tile_cols, ignore_index, needs_mask):
    j = pl.program_id(1)

    @pl.when(j == 0)
    def _():
        acc_ref[...] = jnp.zeros_like(acc_ref)
        cnt_acc_ref[...] = jnp.zeros_like(cnt_acc_ref)

    x = x_ref[...].astype(jnp.float32)   # (1, C, TC): C on sublanes, TC on lanes
    t = t_ref[...]                       # (1, 1, TC) int32 class ids

    _, c, tc = x.shape

    # Numerically stable log-sum-exp over the class (sublane) axis.
    m = jnp.max(x, axis=1, keepdims=True)                               # (1, 1, TC)
    lse = jnp.log(jnp.sum(jnp.exp(x - m), axis=1, keepdims=True)) + m   # (1, 1, TC)

    # x[target] via a one-hot select (no dynamic gather on TPU); no full logp.
    class_ids = jax.lax.broadcasted_iota(jnp.int32, (1, c, tc), 1)
    picked = jnp.sum(jnp.where(class_ids == t, x, 0.0), axis=1, keepdims=True)

    loss = lse - picked                                                 # (1, 1, TC)

    valid = t != ignore_index                                           # (1, 1, TC)
    if needs_mask:  # mask lanes past H*W in the (partial) last column tile
        col = jax.lax.broadcasted_iota(jnp.int32, (1, 1, tc), 2)
        valid = jnp.logical_and(valid, col + j * tile_cols < hw)

    # Per-lane partial sums every step; cross-lane reduce only at the end.
    acc_ref[...] += jnp.where(valid, loss, 0.0)
    cnt_acc_ref[...] += valid.astype(jnp.float32)

    @pl.when(j == pl.num_programs(1) - 1)
    def _():
        loss_ref[...] = jnp.sum(acc_ref[...], axis=2, keepdims=True)
        cnt_ref[...] = jnp.sum(cnt_acc_ref[...], axis=2, keepdims=True)


def cross_entropy_loss_2d(inputs, targets, *, ignore_index=-100,
                          tile_cols=None, target_tile_bytes=2 * 1024 * 1024):
    """inputs: (N, C, H, W) float logits (f32 or bf16); targets: (N, H, W) int
    class ids (entries equal to `ignore_index` are skipped).  Returns a scalar
    f32 = mean over non-ignored pixels of -log_softmax(inputs, dim=1)[target],
    matching PyTorch's CrossEntropyLoss / NLLLoss(log_softmax) default."""
    N, C, H, W = inputs.shape
    HW = H * W

    # Free reshapes (no transpose): class axis stays put, spatial axis becomes
    # the minor, lane-dense axis.
    x = inputs.reshape(N, C, HW)
    t = targets.reshape(N, 1, HW).astype(jnp.int32)

    if tile_cols is None:
        # ~target_tile_bytes of logits per tile; multiple of 128 lanes.
        cols = target_tile_bytes // max(C * inputs.dtype.itemsize, 1)
        cols = min(max((cols // 128) * 128, 128), 32768)
        tile_cols = HW if HW <= cols else cols
    num_tiles = pl.cdiv(HW, tile_cols)
    needs_mask = (HW % tile_cols) != 0

    kernel = partial(_ce2d_kernel, hw=HW, tile_cols=tile_cols,
                     ignore_index=ignore_index, needs_mask=needs_mask)

    loss_parts, cnt_parts = pl.pallas_call(
        kernel,
        out_shape=(jax.ShapeDtypeStruct((N, 1, 1), jnp.float32),
                   jax.ShapeDtypeStruct((N, 1, 1), jnp.float32)),
        grid=(N, num_tiles),
        in_specs=[
            pl.BlockSpec((1, C, tile_cols), lambda n, j: (n, 0, j)),
            pl.BlockSpec((1, 1, tile_cols), lambda n, j: (n, 0, j)),
        ],
        out_specs=(
            pl.BlockSpec((1, 1, 1), lambda n, j: (n, 0, 0)),
            pl.BlockSpec((1, 1, 1), lambda n, j: (n, 0, 0)),
        ),
        scratch_shapes=[
            pltpu.VMEM((1, 1, tile_cols), jnp.float32),
            pltpu.VMEM((1, 1, tile_cols), jnp.float32),
        ],
        compiler_params=pltpu.CompilerParams(
            # batch axis -> both TensorCores on v7x; reduction (column) axis last.
            dimension_semantics=("parallel", "arbitrary")),
    )(x, t)

    return jnp.sum(loss_parts) / jnp.sum(cnt_parts)


def _reference(inputs, targets, *, ignore_index=-100):
    # Pure-JAX reference of F.nll_loss(F.log_softmax(x, dim=1), t) (mean,
    # ignore_index honoured).
    logp = jax.nn.log_softmax(inputs.astype(jnp.float32), axis=1)
    valid = targets != ignore_index
    safe_t = jnp.where(valid, targets, 0)
    picked = jnp.take_along_axis(logp, safe_t[:, None, :, :], axis=1)[:, 0]
    return -jnp.sum(jnp.where(valid, picked, 0.0)) / jnp.sum(valid)


if __name__ == "__main__":
    key = jax.random.PRNGKey(0)
    k1, k2, k3, k4, k5 = jax.random.split(key, 5)

    # Shapes consistent with the UNet prediction head: logits (N, num_classes, H, W).
    N, C, H, W = 2, 5, 16, 16
    logits = jax.random.normal(k1, (N, C, H, W), dtype=jnp.float32)
    targets = jax.random.randint(k2, (N, H, W), 0, C, dtype=jnp.int32)

    loss = cross_entropy_loss_2d(logits, targets)
    jax.block_until_ready(loss)
    ref = _reference(logits, targets)
    assert jnp.allclose(loss, ref, atol=1e-5, rtol=1e-5), (loss, ref)

    # ignore_index handling (PyTorch default -100).
    drop = jax.random.bernoulli(k3, 0.15, (N, H, W))
    targets_ig = jnp.where(drop, -100, targets)
    loss_ig = cross_entropy_loss_2d(logits, targets_ig)
    jax.block_until_ready(loss_ig)
    ref_ig = _reference(logits, targets_ig)
    assert jnp.allclose(loss_ig, ref_ig, atol=1e-5, rtol=1e-5), (loss_ig, ref_ig)

    # Ragged spatial extent exercising the cdiv grid + in-kernel column mask.
    H2, W2 = 18, 18
    logits2 = jax.random.normal(k4, (N, C, H2, W2), dtype=jnp.float32)
    targets2 = jax.random.randint(k5, (N, H2, W2), 0, C, dtype=jnp.int32)
    loss2 = cross_entropy_loss_2d(logits2, targets2, tile_cols=128)
    jax.block_until_ready(loss2)
    ref2 = _reference(logits2, targets2)
    assert jnp.allclose(loss2, ref2, atol=1e-5, rtol=1e-5), (loss2, ref2)

    print("KERNEL_OK")
</pallas_src>

<mosaic_0001>
module attributes {stable_mosaic.version = 11 : i64} {
  func.func @_ce2d_kernel(%arg0: i32, %arg1: i32, %arg2: memref<1x5x256xf32, #tpu.memory_space<vmem>>, %arg3: memref<1x1x256xi32, #tpu.memory_space<vmem>>, %arg4: memref<1x1x1xf32, #tpu.memory_space<vmem>>, %arg5: memref<1x1x1xf32, #tpu.memory_space<vmem>>, %arg6: memref<1x1x256xf32, #tpu.memory_space<vmem>>, %arg7: memref<1x1x256xf32, #tpu.memory_space<vmem>>) attributes {dimension_semantics = [#tpu.dimension_semantics<parallel>, #tpu.dimension_semantics<arbitrary>], iteration_bounds = array<i64: 2, 1>, scalar_prefetch = 0 : i64, scratch_operands = 2 : i64, tpu.core_type = #tpu.core_type<tc>, window_params = [{transform_indices = @transform_0, window_bounds = array<i64: 1, 5, 256>}, {transform_indices = @transform_1, window_bounds = array<i64: 1, 1, 256>}, {transform_indices = @transform_2, window_bounds = array<i64: 1, 1, 1>}, {transform_indices = @transform_3, window_bounds = array<i64: 1, 1, 1>}]} {
    %c0_i32 = arith.constant 0 : i32
    %0 = arith.cmpi eq, %arg1, %c0_i32 : i32
    %1 = arith.extui %0 : i1 to i32
    %c0_i32_0 = arith.constant 0 : i32
    %2 = arith.cmpi ne, %1, %c0_i32_0 : i32
    scf.if %2 {
      %cst_24 = arith.constant 0.000000e+00 : f32
      %37 = vector.broadcast %cst_24 : f32 to vector<1x1x256xf32>
      %c0_25 = arith.constant 0 : index
      %c0_26 = arith.constant 0 : index
      %c0_27 = arith.constant 0 : index
      %38 = vector.load %arg6[%c0_25, %c0_26, %c0_27] : memref<1x1x256xf32, #tpu.memory_space<vmem>>, vector<1x1x256xf32>
      tpu.vector_store %arg6[%c0_25, %c0_26, %c0_27], %37 {strides = array<i32>} : memref<1x1x256xf32, #tpu.memory_space<vmem>>, vector<1x1x256xf32>,
      %cst_28 = arith.constant 0.000000e+00 : f32
      %39 = vector.broadcast %cst_28 : f32 to vector<1x1x256xf32>
      %c0_29 = arith.constant 0 : index
      %c0_30 = arith.constant 0 : index
      %c0_31 = arith.constant 0 : index
      %40 = vector.load %arg7[%c0_29, %c0_30, %c0_31] : memref<1x1x256xf32, #tpu.memory_space<vmem>>, vector<1x1x256xf32>
      tpu.vector_store %arg7[%c0_29, %c0_30, %c0_31], %39 {strides = array<i32>} : memref<1x1x256xf32, #tpu.memory_space<vmem>>, vector<1x1x256xf32>,
    } else {
    }
    %c0 = arith.constant 0 : index
    %c0_1 = arith.constant 0 : index
    %c0_2 = arith.constant 0 : index
    %3 = vector.load %arg2[%c0, %c0_1, %c0_2] : memref<1x5x256xf32, #tpu.memory_space<vmem>>, vector<1x5x256xf32>
    %c0_3 = arith.constant 0 : index
    %c0_4 = arith.constant 0 : index
    %c0_5 = arith.constant 0 : index
    %4 = vector.load %arg3[%c0_3, %c0_4, %c0_5] : memref<1x1x256xi32, #tpu.memory_space<vmem>>, vector<1x1x256xi32>
    %cst = arith.constant dense<0xFF800000> : vector<1x256xf32>
    %5 = vector.multi_reduction <maximumf>, %3, %cst [1] : vector<1x5x256xf32> to vector<1x256xf32>
    %6 = vector.shape_cast %5 : vector<1x256xf32> to vector<1x1x256xf32>
    %7 = vector.broadcast %6 : vector<1x1x256xf32> to vector<1x5x256xf32>
    %8 = arith.subf %3, %7 : vector<1x5x256xf32>
    %9 = math.exp %8 : vector<1x5x256xf32>
    %cst_6 = arith.constant dense<0.000000e+00> : vector<1x256xf32>
    %10 = vector.multi_reduction <add>, %9, %cst_6 [1] : vector<1x5x256xf32> to vector<1x256xf32>
    %11 = vector.shape_cast %10 : vector<1x256xf32> to vector<1x1x256xf32>
    %12 = math.log %11 : vector<1x1x256xf32>
    %13 = arith.addf %12, %6 : vector<1x1x256xf32>
    %14 = tpu.iota {dimensions = array<i32: 1>} : vector<1x5x256xi32>
    %15 = vector.broadcast %4 : vector<1x1x256xi32> to vector<1x5x256xi32>
    %16 = arith.cmpi eq, %14, %15 : vector<1x5x256xi32>
    %cst_7 = arith.constant 0.000000e+00 : f32
    %17 = vector.broadcast %cst_7 : f32 to vector<1x5x256xf32>
    %18 = arith.select %16, %3, %17 : vector<1x5x256xi1>, vector<1x5x256xf32>
    %cst_8 = arith.constant dense<0.000000e+00> : vector<1x256xf32>
    %19 = vector.multi_reduction <add>, %18, %cst_8 [1] : vector<1x5x256xf32> to vector<1x256xf32>
    %20 = vector.shape_cast %19 : vector<1x256xf32> to vector<1x1x256xf32>
    %21 = arith.subf %13, %20 : vector<1x1x256xf32>
    %c-100_i32 = arith.constant -100 : i32
    %22 = vector.broadcast %c-100_i32 : i32 to vector<1x1x256xi32>
    %23 = arith.cmpi ne, %4, %22 : vector<1x1x256xi32>
    %c0_9 = arith.constant 0 : index
    %c0_10 = arith.constant 0 : index
    %c0_11 = arith.constant 0 : index
    %24 = vector.load %arg6[%c0_9, %c0_10, %c0_11] : memref<1x1x256xf32, #tpu.memory_space<vmem>>, vector<1x1x256xf32>
    %cst_12 = arith.constant 0.000000e+00 : f32
    %25 = vector.broadcast %cst_12 : f32 to vector<1x1x256xf32>
    %26 = arith.select %23, %21, %25 : vector<1x1x256xi1>, vector<1x1x256xf32>
    %27 = arith.addf %24, %26 : vector<1x1x256xf32>
    %c0_13 = arith.constant 0 : index
    %c0_14 = arith.constant 0 : index
    %c0_15 = arith.constant 0 : index
    %28 = vector.load %arg6[%c0_13, %c0_14, %c0_15] : memref<1x1x256xf32, #tpu.memory_space<vmem>>, vector<1x1x256xf32>
    tpu.vector_store %arg6[%c0_13, %c0_14, %c0_15], %27 {strides = array<i32>} : memref<1x1x256xf32, #tpu.memory_space<vmem>>, vector<1x1x256xf32>,
    %c0_16 = arith.constant 0 : index
    %c0_17 = arith.constant 0 : index
    %c0_18 = arith.constant 0 : index
    %29 = vector.load %arg7[%c0_16, %c0_17, %c0_18] : memref<1x1x256xf32, #tpu.memory_space<vmem>>, vector<1x1x256xf32>
    %30 = arith.extui %23 : vector<1x1x256xi1> to vector<1x1x256xi32>
    %31 = arith.sitofp %30 : vector<1x1x256xi32> to vector<1x1x256xf32>
    %32 = arith.addf %29, %31 : vector<1x1x256xf32>
    %c0_19 = arith.constant 0 : index
    %c0_20 = arith.constant 0 : index
    %c0_21 = arith.constant 0 : index
    %33 = vector.load %arg7[%c0_19, %c0_20, %c0_21] : memref<1x1x256xf32, #tpu.memory_space<vmem>>, vector<1x1x256xf32>
    tpu.vector_store %arg7[%c0_19, %c0_20, %c0_21], %32 {strides = array<i32>} : memref<1x1x256xf32, #tpu.memory_space<vmem>>, vector<1x1x256xf32>,
    %c0_i32_22 = arith.constant 0 : i32
    %34 = arith.cmpi eq, %arg1, %c0_i32_22 : i32
    %35 = arith.extui %34 : i1 to i32
    %c0_i32_23 = arith.constant 0 : i32
    %36 = arith.cmpi ne, %35, %c0_i32_23 : i32
    scf.if %36 {
      %c0_24 = arith.constant 0 : index
      %c0_25 = arith.constant 0 : index
      %c0_26 = arith.constant 0 : index
      %37 = vector.load %arg6[%c0_24, %c0_25, %c0_26] : memref<1x1x256xf32, #tpu.memory_space<vmem>>, vector<1x1x256xf32>
      %cst_27 = arith.constant dense<0.000000e+00> : vector<1x1xf32>
      %38 = vector.multi_reduction <add>, %37, %cst_27 [2] : vector<1x1x256xf32> to vector<1x1xf32>
      %39 = vector.shape_cast %38 : vector<1x1xf32> to vector<1x1x1xf32>
      %c0_28 = arith.constant 0 : index
      %c0_29 = arith.constant 0 : index
      %c0_30 = arith.constant 0 : index
      %40 = vector.load %arg4[%c0_28, %c0_29, %c0_30] : memref<1x1x1xf32, #tpu.memory_space<vmem>>, vector<1x1x1xf32>
      tpu.vector_store %arg4[%c0_28, %c0_29, %c0_30], %39 {strides = array<i32>} : memref<1x1x1xf32, #tpu.memory_space<vmem>>, vector<1x1x1xf32>,
      %c0_31 = arith.constant 0 : index
      %c0_32 = arith.constant 0 : index
      %c0_33 = arith.constant 0 : index
      %41 = vector.load %arg7[%c0_31, %c0_32, %c0_33] : memref<1x1x256xf32, #tpu.memory_space<vmem>>, vector<1x1x256xf32>
      %cst_34 = arith.constant dense<0.000000e+00> : vector<1x1xf32>
      %42 = vector.multi_reduction <add>, %41, %cst_34 [2] : vector<1x1x256xf32> to vector<1x1xf32>
      %43 = vector.shape_cast %42 : vector<1x1xf32> to vector<1x1x1xf32>
      %c0_35 = arith.constant 0 : index
      %c0_36 = arith.constant 0 : index
      %c0_37 = arith.constant 0 : index
      %44 = vector.load %arg5[%c0_35, %c0_36, %c0_37] : memref<1x1x1xf32, #tpu.memory_space<vmem>>, vector<1x1x1xf32>
      tpu.vector_store %arg5[%c0_35, %c0_36, %c0_37], %43 {strides = array<i32>} : memref<1x1x1xf32, #tpu.memory_space<vmem>>, vector<1x1x1xf32>,
    } else {
    }
    return
  }
  func.func @transform_0(%arg0: i32, %arg1: i32) -> (i32, i32, i32) {
    %c0_i32 = arith.constant 0 : i32
    %c0_i32_0 = arith.constant 0 : i32
    return %arg0, %c0_i32, %arg1 : i32, i32, i32
  }
  func.func @transform_1(%arg0: i32, %arg1: i32) -> (i32, i32, i32) {
    %c0_i32 = arith.constant 0 : i32
    %c0_i32_0 = arith.constant 0 : i32
    return %arg0, %c0_i32, %arg1 : i32, i32, i32
  }
  func.func @transform_2(%arg0: i32, %arg1: i32) -> (i32, i32, i32) {
    %c0_i32 = arith.constant 0 : i32
    %c0_i32_0 = arith.constant 0 : i32
    %c0_i32_1 = arith.constant 0 : i32
    return %arg0, %c0_i32, %c0_i32_0 : i32, i32, i32
  }
  func.func @transform_3(%arg0: i32, %arg1: i32) -> (i32, i32, i32) {
    %c0_i32 = arith.constant 0 : i32
    %c0_i32_0 = arith.constant 0 : i32
    %c0_i32_1 = arith.constant 0 : i32
    return %arg0, %c0_i32, %c0_i32_0 : i32, i32, i32
  }
}

</mosaic_0001>

<llo_original>
// kernel: tpu_custom_call.1
$region0: #{tpu_custom_call.1}
  #allocation0 [shape = 'u32[]', space=smem, size = 0x4, offset = 0x4, fixed_abs, tag = 'smem constant byte address 0x4 - core index']
  #allocation1 [shape = 'u32[72,128]{1,0:T(1,128)}', space=vmem, size = 0x9000, scoped, tag = 'internal scratch']
  #allocation2 [shape = 'f32[1,1,256]{2,1,0:T(1,128)}', space=vmem, size = 0x400, scoped, tag = 'scratch operand']
  #allocation3 [shape = 'f32[1,1,256]{2,1,0:T(1,128)}', space=vmem, size = 0x400, scoped, tag = 'scratch operand']
  %s0 = inlined_call_operand.vmem [shape: f32[2,5,256], index: 0, kind: input, shape index: {}]
  %s1 = inlined_call_operand.vmem [shape: s32[2,1,256], index: 1, kind: input, shape index: {}]
  %s2 = inlined_call_operand.vmem [shape: f32[2,1,1], index: 2, kind: output, shape index: {0}]
  %s3 = inlined_call_operand.vmem [shape: f32[2,1,1], index: 3, kind: output, shape index: {1}]
  %4 = xla_tuple %s2, %s3
  %s5 = sld [smem:[#allocation0]]
  $region57: #{tpu_custom_call.1} parent=0
    _
  %s7 = ssub.s32 1, %s5
  %s8 = scalar_select 0, %s7, %s5
  loop: start=0, step=1, limit=4
  $region2: #{tpu_custom_call.1} parent=0 // loop_pre_header
    _
  $region3: #{tpu_custom_call.1} parent=0 // loop_header
    %s10 = sphi 0, %s14
    %p11 = scmp.ge.s32.totalorder %s10, 4
    %s17 = sphi 0, %s29
    %s18 = sphi 0, %s25
    %s19 = sphi 0, %s17
    %s20 = sphi 0, %s18
    %s21 = sphi 0, %s19
    %s22 = sphi 0, %s20
    %s34 = sphi 0, %s36
    %s37 = sphi 0, %s34
    %s38 = sphi 0, %s37
    %s54 = sphi 0, %s38
    %s62 = sphi 0, %s64
    %s65 = sphi 0, %s62
    %s66 = sphi 0, %s65
    %s82 = sphi 0, %s66
    %s88 = sphi 0, %s90
    %s91 = sphi 0, %s88
    %s92 = sphi 0, %s91
    %s108 = sphi 0, %s92
    %s114 = sphi 0, %s116
    %s117 = sphi 0, %s114
    %s118 = sphi 0, %s117
    %s134 = sphi 0, %s118
  $region4: #{tpu_custom_call.1} parent=0 // loop_header_branch
    %13 = sbr.rel (%p11) target = $region8
  $region5: #{tpu_custom_call.1} parent=0 // loop_body
    %s15 = ssub.s32 %s10, 1
    %s16 = ssub.s32 %s10, 2
    %s23 = sadd.s32 1, %s18
    %p24 = scmp.ge.s32.totalorder %s23, 1
    %s25 = scalar_select %p24, 0, %s23
    %s26 = sadd.s32 1, %s17
    %s27 = scalar_select %p24, %s26, %s17
    %p28 = scmp.ge.s32.totalorder %s27, 2
    %s29 = scalar_select %p28, 0, %s27
    %s30 = ssub.s32 %s17, %s29
    %s31 = ssub.s32 %s18, %s25
    %s32 = sor.u32 %s30, %s31
    %p33 = scmp.eq.s32.totalorder %s32, 0
    %s35 = sadd.s32 %s34, 1
    %s36 = scalar_select %p33, %s34, %s35
    %p39 = pneg %p33
    %p40 = scmp.eq.s32.totalorder %s10, 1
    %p41 = por %p39, %p40
    %p42 = scmp.ne.s32.totalorder %s34, %s37
    %p43 = scmp.eq.s32.totalorder %s10, 0
    %p44 = por %p42, %p43
    %p45 = scmp.ne.s32.totalorder %s34, %s37
    %p46 = scmp.eq.s32.totalorder %s15, 1
    %p47 = por %p45, %p46
    %p48 = scmp.ne.s32.totalorder %s37, %s38
    %p49 = scmp.eq.s32.totalorder %s15, 0
    %p50 = por %p48, %p49
    %p51 = scmp.ne.s32.totalorder %s37, %s38
    %p52 = scmp.eq.s32.totalorder %s16, 1
    %p53 = por %p51, %p52
    %p55 = scmp.ne.s32.totalorder %s38, %s54
    %p56 = scmp.eq.s32.totalorder %s16, 0
    %p57 = por %p55, %p56
    %s58 = ssub.s32 %s17, %s29
    %s59 = ssub.s32 %s18, %s25
    %s60 = sor.u32 %s58, %s59
    %p61 = scmp.eq.s32.totalorder %s60, 0
    %s63 = sadd.s32 %s62, 1
    %s64 = scalar_select %p61, %s62, %s63
    %p67 = pneg %p61
    %p68 = scmp.eq.s32.totalorder %s10, 1
    %p69 = por %p67, %p68
    %p70 = scmp.ne.s32.totalorder %s62, %s65
    %p71 = scmp.eq.s32.totalorder %s10, 0
    %p72 = por %p70, %p71
    %p73 = scmp.ne.s32.totalorder %s62, %s65
    %p74 = scmp.eq.s32.totalorder %s15, 1
    %p75 = por %p73, %p74
    %p76 = scmp.ne.s32.totalorder %s65, %s66
    %p77 = scmp.eq.s32.totalorder %s15, 0
    %p78 = por %p76, %p77
    %p79 = scmp.ne.s32.totalorder %s65, %s66
    %p80 = scmp.eq.s32.totalorder %s16, 1
    %p81 = por %p79, %p80
    %p83 = scmp.ne.s32.totalorder %s66, %s82
    %p84 = scmp.eq.s32.totalorder %s16, 0
    %p85 = por %p83, %p84
    %s86 = ssub.s32 %s17, %s29
    %p87 = scmp.eq.s32.totalorder %s86, 0
    %s89 = sadd.s32 %s88, 1
    %s90 = scalar_select %p87, %s88, %s89
    %p93 = pneg %p87
    %p94 = scmp.eq.s32.totalorder %s10, 1
    %p95 = por %p93, %p94
    %p96 = scmp.ne.s32.totalorder %s88, %s91
    %p97 = scmp.eq.s32.totalorder %s10, 0
    %p98 = por %p96, %p97
    %p99 = scmp.ne.s32.totalorder %s88, %s91
    %p100 = scmp.eq.s32.totalorder %s15, 1
    %p101 = por %p99, %p100
    %p102 = scmp.ne.s32.totalorder %s91, %s92
    %p103 = scmp.eq.s32.totalorder %s15, 0
    %p104 = por %p102, %p103
    %p105 = scmp.ne.s32.totalorder %s91, %s92
    %p106 = scmp.eq.s32.totalorder %s16, 1
    %p107 = por %p105, %p106
    %p109 = scmp.ne.s32.totalorder %s92, %s108
    %p110 = scmp.eq.s32.totalorder %s16, 0
    %p111 = por %p109, %p110
    %s112 = ssub.s32 %s17, %s29
    %p113 = scmp.eq.s32.totalorder %s112, 0
    %s115 = sadd.s32 %s114, 1
    %s116 = scalar_select %p113, %s114, %s115
    %p119 = pneg %p113
    %p120 = scmp.eq.s32.totalorder %s10, 1
    %p121 = por %p119, %p120
    %p122 = scmp.ne.s32.totalorder %s114, %s117
    %p123 = scmp.eq.s32.totalorder %s10, 0
    %p124 = por %p122, %p123
    %p125 = scmp.ne.s32.totalorder %s114, %s117
    %p126 = scmp.eq.s32.totalorder %s15, 1
    %p127 = por %p125, %p126
    %p128 = scmp.ne.s32.totalorder %s117, %s118
    %p129 = scmp.eq.s32.totalorder %s15, 0
    %p130 = por %p128, %p129
    %p131 = scmp.ne.s32.totalorder %s117, %s118
    %p132 = scmp.eq.s32.totalorder %s16, 1
    %p133 = por %p131, %p132
    %p135 = scmp.ne.s32.totalorder %s118, %s134
    %p136 = scmp.eq.s32.totalorder %s16, 0
    %p137 = por %p135, %p136
    %p138 = scmp.le.s32.totalorder 1, %s10
    %p139 = scmp.lt.s32.totalorder %s10, 3
    %p140 = pnand %p138, %p139
    %p141 = pneg %p140
    // Predicated region
    $region9: #{tpu_custom_call.1} parent=5 // pred_check
      _
    $region10: #{tpu_custom_call.1} parent=5 // pred_check_branch
      %143 = sbr.rel (%p140) target = $region12
    $region11: #{tpu_custom_call.1} parent=5 // pred_region
      %s144 = ssub.s32 %s10, 1
    $region12: #{tpu_custom_call.1} parent=5 // pred_fallthru
      _
    %p145 = scmp.lt.s32.totalorder %s10, 2
    // Predicated region
    $region13: #{tpu_custom_call.1} parent=5 // pred_check
      %p146 = pneg %p145
    $region14: #{tpu_custom_call.1} parent=5 // pred_check_branch
      %148 = sbr.rel (%p146) target = $region16
    $region15: #{tpu_custom_call.1} parent=5 // pred_region
      // Predicated region
      $region17: #{tpu_custom_call.1} parent=15 // pred_check
        %p149 = pneg %p44
      $region18: #{tpu_custom_call.1} parent=15 // pred_check_branch
        %151 = sbr.rel (%p149) target = $region20
      $region19: #{tpu_custom_call.1} parent=15 // pred_region
        %s152 = smul.u32 2, %s18
        %p153 = scmp.lt.s32.totalorder %s17, 1
        %s154 = scalar_select %p153, %s17, 1
        %p155 = scmp.lt.s32.totalorder %s152, 1
        %s156 = scalar_select %p155, %s152, 1
        %s157 = smul.addr %s154, 2
        %s158 = sadd.s32 %s156, %s157
        %s159 = smul.addr %s158, 8
        %s160 = scalar_lea.vmem %s0, %s159
        %s161 = smul.u32 2, %s18
      $region20: #{tpu_custom_call.1} parent=15 // pred_fallthru
        _
      // Predicated region
      $region21: #{tpu_custom_call.1} parent=15 // pred_check
        %p162 = pneg %p72
      $region22: #{tpu_custom_call.1} parent=15 // pred_check_branch
        %164 = sbr.rel (%p162) target = $region24
      $region23: #{tpu_custom_call.1} parent=15 // pred_region
        %s165 = smul.u32 2, %s18
        %p166 = scmp.lt.s32.totalorder %s17, 1
        %s167 = scalar_select %p166, %s17, 1
        %p168 = scmp.lt.s32.totalorder %s165, 1
        %s169 = scalar_select %p168, %s165, 1
        %s170 = smul.addr %s167, 2
        %s171 = sadd.s32 %s169, %s170
        %s172 = scalar_lea.vmem %s1, %s171
        %s173 = smul.u32 2, %s18
      $region24: #{tpu_custom_call.1} parent=15 // pred_fallthru
        _
    $region16: #{tpu_custom_call.1} parent=5 // pred_fallthru
      _
    %p174 = scmp.le.s32.totalorder 1, %s10
    %p175 = scmp.lt.s32.totalorder %s10, 3
    %p176 = pnand %p174, %p175
    %p177 = pneg %p176
    // Predicated region
    $region25: #{tpu_custom_call.1} parent=5 // pred_check
      _
    $region26: #{tpu_custom_call.1} parent=5 // pred_check_branch
      %179 = sbr.rel (%p176) target = $region28
    $region27: #{tpu_custom_call.1} parent=5 // pred_region
      %s180 = ssub.s32 %s10, 1
      %s181 = smul.u32 2, %s20
      %p182 = scmp.lt.s32.totalorder %s19, 1
      %s183 = scalar_select %p182, %s19, 1
      %p184 = scmp.lt.s32.totalorder %s181, 1
      %s185 = scalar_select %p184, %s181, 1
      %s186 = smul.addr %s183, 2
      %s187 = sadd.s32 %s185, %s186
      %s188 = smul.addr %s187, 8
      %s189 = scalar_lea.vmem %s0, %s188
      %p190 = pneg %p50
      %p191 = pneg %p47
      %s192 = smul.u32 2, %s20
      %p193 = scmp.lt.s32.totalorder %s19, 1
      %s194 = scalar_select %p193, %s19, 1
      %p195 = scmp.lt.s32.totalorder %s192, 1
      %s196 = scalar_select %p195, %s192, 1
      %s197 = smul.addr %s194, 2
      %s198 = sadd.s32 %s196, %s197
      %s199 = scalar_lea.vmem %s1, %s198
      %p200 = pneg %p78
      %p201 = pneg %p75
      %p202 = pneg %p104
      %p203 = pneg %p101
      %p204 = scmp.lt.s32.totalorder %s19, 1
      %s205 = scalar_select %p204, %s19, 1
      %s206 = scalar_lea.vmem %s2, %s205
      %p207 = pneg %p130
      %p208 = pneg %p127
      %p209 = scmp.lt.s32.totalorder %s19, 1
      %s210 = scalar_select %p209, %s19, 1
      %s211 = scalar_lea.vmem %s3, %s210
      %s212 = smul.u32 2, %s20
      %p213 = scmp.lt.s32.totalorder %s19, 1
      %s214 = scalar_select %p213, %s19, 1
      %p215 = scmp.lt.s32.totalorder %s212, 1
      %s216 = scalar_select %p215, %s212, 1
      %s217 = smul.addr %s214, 2
      %s218 = sadd.s32 %s216, %s217
      %s219 = smul.addr %s218, 8
      %s220 = scalar_lea.vmem %s0, %s219
      %s221 = smul.u32 2, %s20
      %s222 = smul.u32 2, %s20
      %p223 = scmp.lt.s32.totalorder %s19, 1
      %s224 = scalar_select %p223, %s19, 1
      %p225 = scmp.lt.s32.totalorder %s222, 1
      %s226 = scalar_select %p225, %s222, 1
      %s227 = smul.addr %s224, 2
      %s228 = sadd.s32 %s226, %s227
      %s229 = scalar_lea.vmem %s1, %s228
      %s230 = smul.u32 2, %s20
      %p231 = scmp.lt.s32.totalorder %s19, 1
      %s232 = scalar_select %p231, %s19, 1
      %s233 = scalar_lea.vmem %s2, %s232
      %p234 = scmp.lt.s32.totalorder %s19, 1
      %s235 = scalar_select %p234, %s19, 1
      %s236 = scalar_lea.vmem %s3, %s235
      %p237 = scmp.eq.s32.totalorder %s20, 0
      // Predicated region
      $region29: #{tpu_custom_call.1} parent=27 // pred_check
        %p238 = pneg %p237
      $region30: #{tpu_custom_call.1} parent=27 // pred_check_branch
        %240 = sbr.rel (%p238) target = $region32
      $region31: #{tpu_custom_call.1} parent=27 // pred_region
        %v241 = vlaneseq
        %vm242 = vcmp.ge.s32.totalorder %v241, 0
        %vm243 = vcmp.lt.s32.totalorder %v241, 256
        %vm244 = vmand %vm242, %vm243
        %245 = vst.msk [vmem:[#allocation2] sm:$0x3] %vm244, 0.0
        %246 = vst.msk [vmem:[#allocation3] sm:$0x3] %vm244, 0.0
      $region32: #{tpu_custom_call.1} parent=27 // pred_fallthru
        _
      %v247 = vld [vmem:[%s220] sm:$0x1f]
      %v248 = vld [vmem:[%s220 + $0x8] sm:$0x1f]
      %v249 = vld [vmem:[%s229] sm:$0x3]
      %vm250 = vcmask 1044480
      %v251 = vsel %vm250, %v247, -inf
      %v252 = vrot.slane %v251, 4
      %v253 = vmax.f32 %v251, %v252
      %v254 = vrot.slane %v253, 2
      %v255 = vmax.f32 %v253, %v254
      %v256 = vrot.slane %v255, 1
      %v257 = vmax.f32 %v255, %v256
      %v258 = vsel %vm250, %v248, -inf
      %v259 = vrot.slane %v258, 4
      %v260 = vmax.f32 %v258, %v259
      %v261 = vrot.slane %v260, 2
      %v262 = vmax.f32 %v260, %v261
      %v263 = vrot.slane %v262, 1
      %v264 = vmax.f32 %v262, %v263
      %v265 = vsub.f32 %v247, %v257
      %v266 = vsub.f32 %v248, %v264
      %v267 = vmul.f32 %v265, 1.442695
      %v268 = vpow.pop %v267
      %v269 = vmul.f32 %v266, 1.442695
      %v270 = vpow.pop %v269
      %v271 = vsel %vm250, %v268, 0.0
      %v272 = vrot.slane %v271, 4
      %v273 = vadd.f32 %v271, %v272
      %v274 = vrot.slane %v273, 2
      %v275 = vadd.f32 %v273, %v274
      %v276 = vrot.slane %v275, 1
      %v277 = vadd.f32 %v275, %v276
      %v278 = vsel %vm250, %v270, 0.0
      %v279 = vrot.slane %v278, 4
      %v280 = vadd.f32 %v278, %v279
      %v281 = vrot.slane %v280, 2
      %v282 = vadd.f32 %v280, %v281
      %v283 = vrot.slane %v282, 1
      %v284 = vadd.f32 %v282, %v283
      %v285 = vlog2.pop %v277
      %v286 = vmul.f32 %v285, 0.6931472
      %v287 = vlog2.pop %v284
      %v288 = vmul.f32 %v287, 0.6931472
      %v289 = vadd.f32 %v286, %v257
      %v290 = vadd.f32 %v288, %v264
      %v291 = vlaneseq
      %v292 = vshrl.u32 %v291, 7
      %v293 = vperm.slane %v249, 0
      %v294 = vperm.slane %v249, 1
      %vm295 = vcmp.eq.s32.totalorder %v292, %v293
      %vm296 = vcmp.eq.s32.totalorder %v292, %v294
      %v297 = vsel %vm295, %v247, 0.0
      %v298 = vsel %vm296, %v248, 0.0
      %v299 = vsel %vm250, %v297, 0.0
      %v300 = vrot.slane %v299, 4
      %v301 = vadd.f32 %v299, %v300
      %v302 = vrot.slane %v301, 2
      %v303 = vadd.f32 %v301, %v302
      %v304 = vrot.slane %v303, 1
      %v305 = vadd.f32 %v303, %v304
      %v306 = vsel %vm250, %v298, 0.0
      %v307 = vrot.slane %v306, 4
      %v308 = vadd.f32 %v306, %v307
      %v309 = vrot.slane %v308, 2
      %v310 = vadd.f32 %v308, %v309
      %v311 = vrot.slane %v310, 1
      %v312 = vadd.f32 %v310, %v311
      %v313 = vsub.f32 %v289, %v305
      %v314 = vsub.f32 %v290, %v312
      %vm315 = vcmp.ne.s32.totalorder %v249, 4294967196
      %v316 = vld [vmem:[#allocation2] sm:$0x3]
      %v319 = vrot.slane %v314, 7
      %vm320 = vcmask 1040384
      %v321 = vsel %vm320, %v313, %v319
      %v323 = vsel %vm315, %v321, 0.0
      %v324 = vadd.f32 %v316, %v323
      %v325 = vlaneseq
      %vm326 = vcmp.ge.s32.totalorder %v325, 0
      %vm327 = vcmp.lt.s32.totalorder %v325, 256
      %vm328 = vmand %vm326, %vm327
      %329 = vst.msk [vmem:[#allocation2] sm:$0x3] %vm328, %v324
      %v330 = vld [vmem:[#allocation3] sm:$0x3]
      %v331 = vsel %vm315, 1, 0
      %v332 = vcvt.s32.f32 %v331
      %v333 = vadd.f32 %v330, %v332
      %334 = vst.msk [vmem:[#allocation3] sm:$0x3] %vm328, %v333
      // Predicated region
      $region33: #{tpu_custom_call.1} parent=27 // pred_check
        %p335 = pneg %p237
      $region34: #{tpu_custom_call.1} parent=27 // pred_check_branch
        %337 = sbr.rel (%p335) target = $region36
      $region35: #{tpu_custom_call.1} parent=27 // pred_region
        %v338 = vld [vmem:[#allocation2] sm:$0x3]
        %v340 = vperm.slane %v338, 0
        %v341 = vperm.slane %v338, 1
        %v344 = vsel %vm320, %v340, 0.0
        %v345 = vsel %vm320, %v341, 0.0
        %v346 = vadd.f32 %v344, %v345
        %347 = vadd.xlane.f32.xlu0 %v346
        %v348 = vpop.xlane.xlu0 %347
        %vm349 = vcmask 0
        %350 = vst.msk [vmem:[%s233] sm:$0x1] %vm349, %v348
        %v351 = vld [vmem:[#allocation3] sm:$0x3]
        %v353 = vperm.slane %v351, 0
        %v354 = vperm.slane %v351, 1
        %v357 = vsel %vm320, %v353, 0.0
        %v358 = vsel %vm320, %v354, 0.0
        %v359 = vadd.f32 %v357, %v358
        %360 = vadd.xlane.f32.xlu0 %v359
        %v361 = vpop.xlane.xlu0 %360
        %362 = vst.msk [vmem:[%s236] sm:$0x1] %vm349, %v361
      $region36: #{tpu_custom_call.1} parent=27 // pred_fallthru
        _
      %p363 = scmp.lt.s32.totalorder %s19, 1
      %s364 = scalar_select %p363, %s19, 1
      %s365 = scalar_lea.vmem %s2, %s364
      %p366 = scmp.lt.s32.totalorder %s19, 1
      %s367 = scalar_select %p366, %s19, 1
      %s368 = scalar_lea.vmem %s3, %s367
      // Predicated region
      $region37: #{tpu_custom_call.1} parent=27 // pred_check
        %p369 = pneg %p101
      $region38: #{tpu_custom_call.1} parent=27 // pred_check_branch
        %371 = sbr.rel (%p369) target = $region40
      $region39: #{tpu_custom_call.1} parent=27 // pred_region
        _
      $region40: #{tpu_custom_call.1} parent=27 // pred_fallthru
        _
      // Predicated region
      $region41: #{tpu_custom_call.1} parent=27 // pred_check
        %p372 = pneg %p127
      $region42: #{tpu_custom_call.1} parent=27 // pred_check_branch
        %374 = sbr.rel (%p372) target = $region44
      $region43: #{tpu_custom_call.1} parent=27 // pred_region
        _
      $region44: #{tpu_custom_call.1} parent=27 // pred_fallthru
        _
    $region28: #{tpu_custom_call.1} parent=5 // pred_fallthru
      _
    %p375 = scmp.le.s32.totalorder 2, %s10
    // Predicated region
    $region45: #{tpu_custom_call.1} parent=5 // pred_check
      %p376 = pneg %p375
    $region46: #{tpu_custom_call.1} parent=5 // pred_check_branch
      %378 = sbr.rel (%p376) target = $region48
    $region47: #{tpu_custom_call.1} parent=5 // pred_region
      %s379 = ssub.s32 %s10, 2
      // Predicated region
      $region49: #{tpu_custom_call.1} parent=47 // pred_check
        %p380 = pneg %p107
      $region50: #{tpu_custom_call.1} parent=47 // pred_check_branch
        %382 = sbr.rel (%p380) target = $region52
      $region51: #{tpu_custom_call.1} parent=47 // pred_region
        %p383 = scmp.lt.s32.totalorder %s21, 1
        %s384 = scalar_select %p383, %s21, 1
        %s385 = scalar_lea.vmem %s2, %s384
      $region52: #{tpu_custom_call.1} parent=47 // pred_fallthru
        _
      // Predicated region
      $region53: #{tpu_custom_call.1} parent=47 // pred_check
        %p386 = pneg %p133
      $region54: #{tpu_custom_call.1} parent=47 // pred_check_branch
        %388 = sbr.rel (%p386) target = $region56
      $region55: #{tpu_custom_call.1} parent=47 // pred_region
        %p389 = scmp.lt.s32.totalorder %s21, 1
        %s390 = scalar_select %p389, %s21, 1
        %s391 = scalar_lea.vmem %s3, %s390
      $region56: #{tpu_custom_call.1} parent=47 // pred_fallthru
        _
    $region48: #{tpu_custom_call.1} parent=5 // pred_fallthru
      _
  $region6: #{tpu_custom_call.1} parent=0 // loop_footer
    %s14 = sadd.s32 1, %s10
  $region7: #{tpu_custom_call.1} parent=0 // loop_footer_branch
    %9 = sbr.rel target = $region3
  $region8: #{tpu_custom_call.1} parent=0 // loop_exit
    _

</llo_original>
